<compile_context>
chip_gen: v7x
topology: tpu7x:2x2x1
jax: 0.10.0
libtpu: 0.0.40
codegen_flags: <defaults>
</compile_context>

<pallas_src>
import functools
import math

import jax
import jax.numpy as jnp
from jax.experimental import pallas as pl
from jax.experimental.pallas import tpu as pltpu


def _round_up(n: int, m: int) -> int:
    return ((n + m - 1) // m) * m


def _wsmodel_kernel(seed_ref, x_ref, w1t_ref, w2t_ref, out_ref, *, noise: float):
    """One batch tile: noisy x -> Linear1 -> noisy ReLU -> Linear2 -> noisy out."""
    apply_noise = noise > 0.0            # static Python bool (noise is a closure const)
    lo = 1.0 - noise
    span = 2.0 * noise

    if apply_noise:
        rows = x_ref.shape[0]
        seed_u = seed_ref[0].astype(jnp.uint32)
        tile_u = pl.program_id(0).astype(jnp.uint32)
        # Mix seed and batch-tile id with large odd constants so nearby seeds /
        # tiles give disjoint streams (review: plain seed+tile overlapped).
        base0 = (seed_u * jnp.uint32(0x9E3779B1)) ^ (tile_u * jnp.uint32(0x85EBCA77))
        # Hoisted per-row key, broadcast across lanes in every unif() call.
        row_key = (jax.lax.broadcasted_iota(jnp.int32, (rows, 1), 0).astype(jnp.uint32)
                   * jnp.uint32(0x9E3779B9)) + base0

        def unif(shape, stream):
            """Counter-hash RNG -> U(lo, lo+span). Plain jnp ops only (no pltpu.prng_*)."""
            col = (jax.lax.broadcasted_iota(jnp.int32, shape, 1).astype(jnp.uint32)
                   * jnp.uint32(0x27D4EB2F))
            v = col + (row_key + jnp.uint32(stream))          # [rows, d]
            # Cheap xorshift-multiply finalizer (quality/cost trade-off is tunable).
            v = v ^ (v >> 16)
            v = v * jnp.uint32(0x7FEB352D)
            v = v ^ (v >> 15)
            # Mantissa trick: bits -> float32 in [1, 2); (-1) folded into constants.
            mant = (v & jnp.uint32(0x007FFFFF)) | jnp.uint32(0x3F800000)
            f12 = jax.lax.bitcast_convert_type(mant, jnp.float32)
            return f12 * span + (lo - span)                   # U(lo, lo+span)

    # x = apply_noise(x)   (x arrives in its HBM dtype, typically f32)
    x = x_ref[...]
    if apply_noise:
        x = x * unif(x.shape, 0x00000000)
    xb = x.astype(jnp.bfloat16)

    # h = apply_noise(Linear1(x)); h = apply_noise(ReLU(h))
    h = jnp.dot(xb, w1t_ref[...], preferred_element_type=jnp.float32)      # [tb, HidP] f32
    if apply_noise:
        # ReLU(h*n1)*n2 == ReLU(h)*(n1*n2) since noise < 1 guarantees n1 > 0.
        h = h * (unif(h.shape, 0x61C88647) * unif(h.shape, 0xC2B2AE35))
    h = jnp.maximum(h, 0.0)

    # y = apply_noise(Linear2(h))
    y = jnp.dot(h.astype(jnp.bfloat16), w2t_ref[...],
                preferred_element_type=jnp.float32)                        # [tb, OutP] f32
    if apply_noise:
        y = y * unif(y.shape, 0x1B873593)

    out_ref[...] = y.astype(out_ref.dtype)


def wsmodel_prepare(w1, w2, compute_dtype=jnp.bfloat16):
    """Pad + transpose the (static) weights once. Cache the result across calls."""
    hid, d_in = w1.shape
    out, hid2 = w2.shape
    assert hid2 == hid, "w2 must be [out_features, hidden_units]"
    hid_p = _round_up(hid, 128)
    out_p = _round_up(out, 128)
    w1t = jnp.zeros((d_in, hid_p), compute_dtype).at[:, :hid].set(
        jnp.transpose(w1).astype(compute_dtype))
    w2t = jnp.zeros((hid_p, out_p), compute_dtype).at[:hid, :out].set(
        jnp.transpose(w2).astype(compute_dtype))
    return w1t, w2t


def wsmodel_forward_prepared(x_nchw, w1t, w2t, out_features, noise, seed, *,
                             block_b: int = 1024, out_dtype=jnp.bfloat16):
    """x_nchw: [B, C, H, W]; w1t: [Din, HidP] bf16; w2t: [HidP, OutP] bf16."""
    noise = float(noise)
    if not (0.0 <= noise < 1.0):
        # ReLU/noise fusion inside the kernel requires 1 - noise > 0.
        raise ValueError(f"noise must be in [0, 1), got {noise}")

    B = x_nchw.shape[0]
    d_in = math.prod(x_nchw.shape[1:])          # static python int (jit-safe)
    assert w1t.shape[0] == d_in, "w1t does not match the flattened input size"
    hid_p = w1t.shape[1]
    out_p = w2t.shape[1]

    # Batch tiling: multiple of 8 rows, up to block_b; when the whole batch fits a
    # single tile, split it in two so both v7x TensorCores get work (no-op on v5e/v6e).
    b8 = _round_up(B, 8)
    tb = min(_round_up(block_b, 8), b8)
    if b8 > 8 and b8 <= tb:
        tb = _round_up(-(-b8 // 2), 8)
    b_pad = _round_up(B, tb)

    # Flatten (nn.Flatten) — free metadata reshape; keep x in its native dtype and
    # cast to bf16 inside the kernel (no wrapper-side cast pass over HBM).
    x_flat = x_nchw.reshape(B, d_in)
    if b_pad != B:
        # TODO(synk): for B % tb != 0 this pad is one extra HBM pass; pick tb | B upstream.
        x_flat = jnp.pad(x_flat, ((0, b_pad - B), (0, 0)))

    seed_arr = jnp.asarray([int(seed) & 0x7FFFFFFF], dtype=jnp.int32)
    kernel = functools.partial(_wsmodel_kernel, noise=noise)

    y_pad = pl.pallas_call(
        kernel,
        out_shape=jax.ShapeDtypeStruct((b_pad, out_p), out_dtype),
        grid_spec=pltpu.PrefetchScalarGridSpec(
            num_scalar_prefetch=1,                     # seed -> SMEM
            grid=(b_pad // tb,),
            in_specs=[
                pl.BlockSpec((tb, d_in), lambda i, s: (i, 0)),      # x tile (streamed)
                pl.BlockSpec((d_in, hid_p), lambda i, s: (0, 0)),   # W1^T (VMEM-resident)
                pl.BlockSpec((hid_p, out_p), lambda i, s: (0, 0)),  # W2^T (VMEM-resident)
            ],
            out_specs=pl.BlockSpec((tb, out_p), lambda i, s: (i, 0)),
        ),
        compiler_params=pltpu.CompilerParams(
            dimension_semantics=("parallel",),          # batch tiles independent (2 TCs on v7x)
            vmem_limit_bytes=48 * 1024 * 1024,          # safe on v5e/v6e (128 MiB) and v7x (64 MiB)
        ),
    )(seed_arr, x_flat, w1t, w2t)

    # TODO(synk): this slice is one extra (bf16-sized) copy; return y_pad directly
    # if the consumer can tolerate the 128-lane / batch padding.
    return y_pad[:B, :out_features]


def wsmodel_forward(x_nchw, w1, w2, noise, seed, **kwargs):
    """Convenience one-shot wrapper (prepares weights every call; prefer caching)."""
    w1t, w2t = wsmodel_prepare(w1, w2)
    return wsmodel_forward_prepared(x_nchw, w1t, w2t, w2.shape[0], noise, seed, **kwargs)


if __name__ == "__main__":
    # Small shapes consistent with the module: [B, C, H, W] flattened to
    # input_shape = C*H*W, then hidden_units -> output_shape.
    B, C, H, W = 2, 1, 8, 8          # input_shape = 64
    hidden_units = 32
    output_shape = 10
    noise = 0.1

    key = jax.random.PRNGKey(0)
    kx, kw1, kw2 = jax.random.split(key, 3)

    x = jax.random.normal(kx, (B, C, H, W), jnp.float32)
    d_in = C * H * W
    # Deterministic "Kaiming-ish" init (matches nn.Linear shapes, bias=False).
    w1 = jax.random.uniform(kw1, (hidden_units, d_in), jnp.float32,
                            -1.0 / math.sqrt(d_in), 1.0 / math.sqrt(d_in))
    w2 = jax.random.uniform(kw2, (output_shape, hidden_units), jnp.float32,
                            -1.0 / math.sqrt(hidden_units),
                            1.0 / math.sqrt(hidden_units))

    # Weight prep hoisted out of the per-call path (cache this in real use).
    w1t, w2t = wsmodel_prepare(w1, w2)

    # Real forward with multiplicative noise (in-kernel counter-hash RNG;
    # statistically equivalent to U(1-noise, 1+noise), not bit-identical to torch).
    y = wsmodel_forward_prepared(x, w1t, w2t, output_shape, noise, seed=1234)
    jax.block_until_ready(y)
    assert y.shape == (B, output_shape)
    assert bool(jnp.all(jnp.isfinite(y.astype(jnp.float32))))

    # Correctness check: noise = 0.0 disables every noise multiply, so the kernel
    # must match the plain forward pass (bf16 operands, f32 MXU accumulation,
    # bf16 output — mirrored in the reference).
    y0 = wsmodel_forward_prepared(x, w1t, w2t, output_shape, 0.0, seed=0)
    jax.block_until_ready(y0)
    xb = x.reshape(B, d_in).astype(jnp.bfloat16).astype(jnp.float32)
    w1b = w1.astype(jnp.bfloat16).astype(jnp.float32)
    w2b = w2.astype(jnp.bfloat16).astype(jnp.float32)
    hr = jnp.maximum(xb @ w1b.T, 0.0)
    yr = hr.astype(jnp.bfloat16).astype(jnp.float32) @ w2b.T
    yr_bf = yr.astype(jnp.bfloat16).astype(jnp.float32)
    assert jnp.allclose(y0.astype(jnp.float32), yr_bf, atol=2e-2, rtol=2e-2), \
        "mismatch vs JAX reference"

    # Sanity: the noisy forward actually differs from the noise-free one.
    assert float(jnp.max(jnp.abs(y.astype(jnp.float32) - y0.astype(jnp.float32)))) > 1e-6

    print("KERNEL_OK")
</pallas_src>

<mosaic_0001>
module attributes {stable_mosaic.version = 11 : i64} {
  func.func @_wsmodel_kernel(%arg0: i32, %arg1: memref<1xi32, #tpu.memory_space<smem>>, %arg2: memref<8x64xf32, #tpu.memory_space<vmem>>, %arg3: memref<64x128xbf16, #tpu.memory_space<vmem>>, %arg4: memref<128x128xbf16, #tpu.memory_space<vmem>>, %arg5: memref<8x128xbf16, #tpu.memory_space<vmem>>) attributes {dimension_semantics = [#tpu.dimension_semantics<parallel>], iteration_bounds = array<i64: 1>, scalar_prefetch = 1 : i64, scratch_operands = 0 : i64, tpu.core_type = #tpu.core_type<tc>, window_params = [{transform_indices = @transform_0, window_bounds = array<i64: 8, 64>}, {pipeline_mode = #tpu.pipeline_mode<synchronous>, transform_indices = @transform_1, window_bounds = array<i64: 64, 128>}, {pipeline_mode = #tpu.pipeline_mode<synchronous>, transform_indices = @transform_2, window_bounds = array<i64: 128, 128>}, {transform_indices = @transform_3, window_bounds = array<i64: 8, 128>}]} {
    %c0 = arith.constant 0 : index
    %0 = memref.load %arg1[%c0] : memref<1xi32, #tpu.memory_space<smem>>
    %c-1640531535_i32 = arith.constant -1640531535 : i32
    %1 = arith.muli %0, %c-1640531535_i32 : i32
    %c-2048144777_i32 = arith.constant -2048144777 : i32
    %2 = arith.muli %arg0, %c-2048144777_i32 : i32
    %3 = arith.xori %1, %2 : i32
    %4 = tpu.iota {dimensions = array<i32: 0>} : vector<8x1xi32>
    %c-1640531527_i32 = arith.constant -1640531527 : i32
    %5 = vector.broadcast %c-1640531527_i32 : i32 to vector<8x1xi32>
    %6 = arith.muli %4, %5 : vector<8x1xi32>
    %7 = vector.broadcast %3 : i32 to vector<8x1xi32>
    %8 = arith.addi %6, %7 : vector<8x1xi32>
    %c0_0 = arith.constant 0 : index
    %c0_1 = arith.constant 0 : index
    %9 = vector.load %arg2[%c0_0, %c0_1] : memref<8x64xf32, #tpu.memory_space<vmem>>, vector<8x64xf32>
    %10 = tpu.iota {dimensions = array<i32: 1>} : vector<8x64xi32>
    %c668265263_i32 = arith.constant 668265263 : i32
    %11 = vector.broadcast %c668265263_i32 : i32 to vector<8x64xi32>
    %12 = arith.muli %10, %11 : vector<8x64xi32>
    %c0_i32 = arith.constant 0 : i32
    %13 = vector.broadcast %c0_i32 : i32 to vector<8x1xi32>
    %14 = arith.addi %8, %13 : vector<8x1xi32>
    %15 = vector.broadcast %14 : vector<8x1xi32> to vector<8x64xi32>
    %16 = arith.addi %12, %15 : vector<8x64xi32>
    %c16_i32 = arith.constant 16 : i32
    %17 = vector.broadcast %c16_i32 : i32 to vector<8x64xi32>
    %18 = arith.shrui %16, %17 : vector<8x64xi32>
    %19 = arith.xori %16, %18 : vector<8x64xi32>
    %c2146121005_i32 = arith.constant 2146121005 : i32
    %20 = vector.broadcast %c2146121005_i32 : i32 to vector<8x64xi32>
    %21 = arith.muli %19, %20 : vector<8x64xi32>
    %c15_i32 = arith.constant 15 : i32
    %22 = vector.broadcast %c15_i32 : i32 to vector<8x64xi32>
    %23 = arith.shrui %21, %22 : vector<8x64xi32>
    %24 = arith.xori %21, %23 : vector<8x64xi32>
    %c8388607_i32 = arith.constant 8388607 : i32
    %25 = vector.broadcast %c8388607_i32 : i32 to vector<8x64xi32>
    %26 = arith.andi %24, %25 : vector<8x64xi32>
    %c1065353216_i32 = arith.constant 1065353216 : i32
    %27 = vector.broadcast %c1065353216_i32 : i32 to vector<8x64xi32>
    %28 = arith.ori %26, %27 : vector<8x64xi32>
    %29 = tpu.bitcast %28 : vector<8x64xi32> -> vector<8x64xf32>
    %cst = arith.constant 2.000000e-01 : f32
    %30 = vector.broadcast %cst : f32 to vector<8x64xf32>
    %31 = arith.mulf %29, %30 : vector<8x64xf32>
    %cst_2 = arith.constant 0.699999988 : f32
    %32 = vector.broadcast %cst_2 : f32 to vector<8x64xf32>
    %33 = arith.addf %31, %32 : vector<8x64xf32>
    %34 = arith.mulf %9, %33 : vector<8x64xf32>
    %35 = arith.truncf %34 : vector<8x64xf32> to vector<8x64xbf16>
    %c0_3 = arith.constant 0 : index
    %c0_4 = arith.constant 0 : index
    %36 = vector.load %arg3[%c0_3, %c0_4] : memref<64x128xbf16, #tpu.memory_space<vmem>>, vector<64x128xbf16>
    %cst_5 = arith.constant dense<0.000000e+00> : vector<8x128xf32>
    %37 = tpu.matmul %35, %36, %cst_5 {dimension_numbers = #tpu.dot_dimension_numbers<[1], [0], [0], [1], [0, 0, 1, 1], [], []>} : vector<8x64xbf16>, vector<64x128xbf16>, vector<8x128xf32> -> vector<8x128xf32>
    %38 = tpu.iota {dimensions = array<i32: 1>} : vector<8x128xi32>
    %c668265263_i32_6 = arith.constant 668265263 : i32
    %39 = vector.broadcast %c668265263_i32_6 : i32 to vector<8x128xi32>
    %40 = arith.muli %38, %39 : vector<8x128xi32>
    %c1640531527_i32 = arith.constant 1640531527 : i32
    %41 = vector.broadcast %c1640531527_i32 : i32 to vector<8x1xi32>
    %42 = arith.addi %8, %41 : vector<8x1xi32>
    %43 = vector.broadcast %42 : vector<8x1xi32> to vector<8x128xi32>
    %44 = arith.addi %40, %43 : vector<8x128xi32>
    %c16_i32_7 = arith.constant 16 : i32
    %45 = vector.broadcast %c16_i32_7 : i32 to vector<8x128xi32>
    %46 = arith.shrui %44, %45 : vector<8x128xi32>
    %47 = arith.xori %44, %46 : vector<8x128xi32>
    %c2146121005_i32_8 = arith.constant 2146121005 : i32
    %48 = vector.broadcast %c2146121005_i32_8 : i32 to vector<8x128xi32>
    %49 = arith.muli %47, %48 : vector<8x128xi32>
    %c15_i32_9 = arith.constant 15 : i32
    %50 = vector.broadcast %c15_i32_9 : i32 to vector<8x128xi32>
    %51 = arith.shrui %49, %50 : vector<8x128xi32>
    %52 = arith.xori %49, %51 : vector<8x128xi32>
    %c8388607_i32_10 = arith.constant 8388607 : i32
    %53 = vector.broadcast %c8388607_i32_10 : i32 to vector<8x128xi32>
    %54 = arith.andi %52, %53 : vector<8x128xi32>
    %c1065353216_i32_11 = arith.constant 1065353216 : i32
    %55 = vector.broadcast %c1065353216_i32_11 : i32 to vector<8x128xi32>
    %56 = arith.ori %54, %55 : vector<8x128xi32>
    %57 = tpu.bitcast %56 : vector<8x128xi32> -> vector<8x128xf32>
    %cst_12 = arith.constant 2.000000e-01 : f32
    %58 = vector.broadcast %cst_12 : f32 to vector<8x128xf32>
    %59 = arith.mulf %57, %58 : vector<8x128xf32>
    %cst_13 = arith.constant 0.699999988 : f32
    %60 = vector.broadcast %cst_13 : f32 to vector<8x128xf32>
    %61 = arith.addf %59, %60 : vector<8x128xf32>
    %62 = tpu.iota {dimensions = array<i32: 1>} : vector<8x128xi32>
    %c668265263_i32_14 = arith.constant 668265263 : i32
    %63 = vector.broadcast %c668265263_i32_14 : i32 to vector<8x128xi32>
    %64 = arith.muli %62, %63 : vector<8x128xi32>
    %c-1028477387_i32 = arith.constant -1028477387 : i32
    %65 = vector.broadcast %c-1028477387_i32 : i32 to vector<8x1xi32>
    %66 = arith.addi %8, %65 : vector<8x1xi32>
    %67 = vector.broadcast %66 : vector<8x1xi32> to vector<8x128xi32>
    %68 = arith.addi %64, %67 : vector<8x128xi32>
    %c16_i32_15 = arith.constant 16 : i32
    %69 = vector.broadcast %c16_i32_15 : i32 to vector<8x128xi32>
    %70 = arith.shrui %68, %69 : vector<8x128xi32>
    %71 = arith.xori %68, %70 : vector<8x128xi32>
    %c2146121005_i32_16 = arith.constant 2146121005 : i32
    %72 = vector.broadcast %c2146121005_i32_16 : i32 to vector<8x128xi32>
    %73 = arith.muli %71, %72 : vector<8x128xi32>
    %c15_i32_17 = arith.constant 15 : i32
    %74 = vector.broadcast %c15_i32_17 : i32 to vector<8x128xi32>
    %75 = arith.shrui %73, %74 : vector<8x128xi32>
    %76 = arith.xori %73, %75 : vector<8x128xi32>
    %c8388607_i32_18 = arith.constant 8388607 : i32
    %77 = vector.broadcast %c8388607_i32_18 : i32 to vector<8x128xi32>
    %78 = arith.andi %76, %77 : vector<8x128xi32>
    %c1065353216_i32_19 = arith.constant 1065353216 : i32
    %79 = vector.broadcast %c1065353216_i32_19 : i32 to vector<8x128xi32>
    %80 = arith.ori %78, %79 : vector<8x128xi32>
    %81 = tpu.bitcast %80 : vector<8x128xi32> -> vector<8x128xf32>
    %cst_20 = arith.constant 2.000000e-01 : f32
    %82 = vector.broadcast %cst_20 : f32 to vector<8x128xf32>
    %83 = arith.mulf %81, %82 : vector<8x128xf32>
    %cst_21 = arith.constant 0.699999988 : f32
    %84 = vector.broadcast %cst_21 : f32 to vector<8x128xf32>
    %85 = arith.addf %83, %84 : vector<8x128xf32>
    %86 = arith.mulf %61, %85 : vector<8x128xf32>
    %87 = arith.mulf %37, %86 : vector<8x128xf32>
    %cst_22 = arith.constant 0.000000e+00 : f32
    %88 = vector.broadcast %cst_22 : f32 to vector<8x128xf32>
    %89 = arith.maximumf %87, %88 : vector<8x128xf32>
    %90 = arith.truncf %89 : vector<8x128xf32> to vector<8x128xbf16>
    %c0_23 = arith.constant 0 : index
    %c0_24 = arith.constant 0 : index
    %91 = vector.load %arg4[%c0_23, %c0_24] : memref<128x128xbf16, #tpu.memory_space<vmem>>, vector<128x128xbf16>
    %cst_25 = arith.constant dense<0.000000e+00> : vector<8x128xf32>
    %92 = tpu.matmul %90, %91, %cst_25 {dimension_numbers = #tpu.dot_dimension_numbers<[1], [0], [0], [1], [0, 0, 1, 1], [], []>} : vector<8x128xbf16>, vector<128x128xbf16>, vector<8x128xf32> -> vector<8x128xf32>
    %93 = tpu.iota {dimensions = array<i32: 1>} : vector<8x128xi32>
    %c668265263_i32_26 = arith.constant 668265263 : i32
    %94 = vector.broadcast %c668265263_i32_26 : i32 to vector<8x128xi32>
    %95 = arith.muli %93, %94 : vector<8x128xi32>
    %c461845907_i32 = arith.constant 461845907 : i32
    %96 = vector.broadcast %c461845907_i32 : i32 to vector<8x1xi32>
    %97 = arith.addi %8, %96 : vector<8x1xi32>
    %98 = vector.broadcast %97 : vector<8x1xi32> to vector<8x128xi32>
    %99 = arith.addi %95, %98 : vector<8x128xi32>
    %c16_i32_27 = arith.constant 16 : i32
    %100 = vector.broadcast %c16_i32_27 : i32 to vector<8x128xi32>
    %101 = arith.shrui %99, %100 : vector<8x128xi32>
    %102 = arith.xori %99, %101 : vector<8x128xi32>
    %c2146121005_i32_28 = arith.constant 2146121005 : i32
    %103 = vector.broadcast %c2146121005_i32_28 : i32 to vector<8x128xi32>
    %104 = arith.muli %102, %103 : vector<8x128xi32>
    %c15_i32_29 = arith.constant 15 : i32
    %105 = vector.broadcast %c15_i32_29 : i32 to vector<8x128xi32>
    %106 = arith.shrui %104, %105 : vector<8x128xi32>
    %107 = arith.xori %104, %106 : vector<8x128xi32>
    %c8388607_i32_30 = arith.constant 8388607 : i32
    %108 = vector.broadcast %c8388607_i32_30 : i32 to vector<8x128xi32>
    %109 = arith.andi %107, %108 : vector<8x128xi32>
    %c1065353216_i32_31 = arith.constant 1065353216 : i32
    %110 = vector.broadcast %c1065353216_i32_31 : i32 to vector<8x128xi32>
    %111 = arith.ori %109, %110 : vector<8x128xi32>
    %112 = tpu.bitcast %111 : vector<8x128xi32> -> vector<8x128xf32>
    %cst_32 = arith.constant 2.000000e-01 : f32
    %113 = vector.broadcast %cst_32 : f32 to vector<8x128xf32>
    %114 = arith.mulf %112, %113 : vector<8x128xf32>
    %cst_33 = arith.constant 0.699999988 : f32
    %115 = vector.broadcast %cst_33 : f32 to vector<8x128xf32>
    %116 = arith.addf %114, %115 : vector<8x128xf32>
    %117 = arith.mulf %92, %116 : vector<8x128xf32>
    %118 = arith.truncf %117 : vector<8x128xf32> to vector<8x128xbf16>
    %c0_34 = arith.constant 0 : index
    %c0_35 = arith.constant 0 : index
    %119 = vector.load %arg5[%c0_34, %c0_35] : memref<8x128xbf16, #tpu.memory_space<vmem>>, vector<8x128xbf16>
    tpu.vector_store %arg5[%c0_34, %c0_35], %118 {strides = array<i32>} : memref<8x128xbf16, #tpu.memory_space<vmem>>, vector<8x128xbf16>,
    return
  }
  func.func @transform_0(%arg0: i32, %arg1: memref<1xi32, #tpu.memory_space<smem>>) -> (i32, i32) {
    %c0_i32 = arith.constant 0 : i32
    %c0_i32_0 = arith.constant 0 : i32
    return %arg0, %c0_i32 : i32, i32
  }
  func.func @transform_1(%arg0: i32, %arg1: memref<1xi32, #tpu.memory_space<smem>>) -> (i32, i32) {
    %c0_i32 = arith.constant 0 : i32
    %c0_i32_0 = arith.constant 0 : i32
    %c0_i32_1 = arith.constant 0 : i32
    return %c0_i32, %c0_i32_0 : i32, i32
  }
  func.func @transform_2(%arg0: i32, %arg1: memref<1xi32, #tpu.memory_space<smem>>) -> (i32, i32) {
    %c0_i32 = arith.constant 0 : i32
    %c0_i32_0 = arith.constant 0 : i32
    %c0_i32_1 = arith.constant 0 : i32
    return %c0_i32, %c0_i32_0 : i32, i32
  }
  func.func @transform_3(%arg0: i32, %arg1: memref<1xi32, #tpu.memory_space<smem>>) -> (i32, i32) {
    %c0_i32 = arith.constant 0 : i32
    %c0_i32_0 = arith.constant 0 : i32
    return %arg0, %c0_i32 : i32, i32
  }
}

</mosaic_0001>

<llo_original>
// kernel: tpu_custom_call.1
$region0: #{tpu_custom_call.1}
  #allocation0 [shape = 'u32[]', space=smem, size = 0x4, offset = 0x4, fixed_abs, tag = 'smem constant byte address 0x4 - core index']
  #allocation1 [shape = 'u32[144,128]{1,0:T(1,128)}', space=vmem, size = 0x12000, scoped, tag = 'internal scratch']
  #allocation2 [shape = 's32[1]{0}', space=sflag, size = 0x4, scoped, tag = 'scoped memory for tpu_custom_call.1']
  #allocation3 [shape = 's32[1]{0:T(128)S(6)}', space=smem, size = 0x200, scoped, tag = 'prefetched SMEM operand 0']
  %s0 = inlined_call_operand.<no memory space> [shape: s32[1], index: 0, kind: input, shape index: {}]
  %s1 = inlined_call_operand.hbm [shape: f32[8,64], index: 1, kind: input, shape index: {}]
  %s2 = inlined_call_operand.hbm [shape: bf16[64,128], index: 2, kind: input, shape index: {}]
  %s3 = inlined_call_operand.hbm [shape: bf16[128,128], index: 3, kind: input, shape index: {}]
  %s4 = inlined_call_operand.hbm [shape: bf16[8,128], index: 4, kind: output, shape index: {}]
  %s5 = sld [smem:[#allocation0]]
  $region34: #{tpu_custom_call.1} parent=0
    _
  %s7 = ssub.s32 1, %s5
  %s8 = scalar_select 0, %s7, %s5
  %9 = sst [smem:[#allocation3]] %s0
  $region1: #{tpu_custom_call.1} parent=0
    #allocation4 [shape = 'u8[4096]{0}', space=vmem, size = 0x1000, scoped, tag = 'input window, operand 1, single buffered']
    #allocation5 [shape = 's32[1]{0}', space=sflag, size = 0x4, scoped, tag = 'scoped memory for tpu_custom_call.1']
    #allocation6 [shape = 's32[1]{0}', space=sflag, size = 0x4, scoped, tag = 'scoped memory for tpu_custom_call.1']
    #allocation7 [shape = 'u8[16384]{0}', space=vmem, size = 0x4000, scoped, tag = 'input window, operand 2, single buffered']
    #allocation8 [shape = 's32[1]{0}', space=sflag, size = 0x4, scoped, tag = 'scoped memory for tpu_custom_call.1']
    #allocation9 [shape = 'u8[32768]{0}', space=vmem, size = 0x8000, scoped, tag = 'input window, operand 3, single buffered']
    #allocation10 [shape = 'u8[2048]{0}', space=vmem, size = 0x800, scoped, tag = 'output window, operand 0, single buffered']
    %10 = vsyncpa [#allocation5], 0
    %11 = vsyncpa [#allocation8], 0
    %12 = vsyncpa [#allocation6], 0
    // Predicated region
    $region2: #{tpu_custom_call.1} parent=1 // pred_check
      _
    $region3: #{tpu_custom_call.1} parent=1 // pred_check_branch
      %14 = sbr.rel (0) target = $region5
    $region4: #{tpu_custom_call.1} parent=1 // pred_region
      %s16 = ssub.s32 128, 128
      %17 = vsyncadd [#allocation5], %s16
      %s19 = sshll.u32 [#allocation4], 4
      %s20 = int_to_ptr.vmem [resolvable:$true] %s19
      %22 = dma.hbm_to_vmem [thread:$0]  %s1, 128, %s20, [#allocation5]
    $region5: #{tpu_custom_call.1} parent=1 // pred_fallthru
      _
    // Predicated region
    $region6: #{tpu_custom_call.1} parent=1 // pred_check
      _
    $region7: #{tpu_custom_call.1} parent=1 // pred_check_branch
      %24 = sbr.rel (0) target = $region9
    $region8: #{tpu_custom_call.1} parent=1 // pred_region
      %s26 = ssub.s32 512, 512
      %27 = vsyncadd [#allocation8], %s26
      %s28 = sshll.u32 [#allocation7], 4
      %s29 = int_to_ptr.vmem [resolvable:$true] %s28
      %34 = dma.hbm_to_vmem [thread:$0]  %s2, 512, %s29, [#allocation8], 64, 64, 4
    $region9: #{tpu_custom_call.1} parent=1 // pred_fallthru
      _
    // Predicated region
    $region10: #{tpu_custom_call.1} parent=1 // pred_check
      _
    $region11: #{tpu_custom_call.1} parent=1 // pred_check_branch
      %36 = sbr.rel (0) target = $region13
    $region12: #{tpu_custom_call.1} parent=1 // pred_region
      %s38 = ssub.s32 1024, 1024
      %39 = vsyncadd [#allocation8], %s38
      %s40 = sshll.u32 [#allocation9], 4
      %s41 = int_to_ptr.vmem [resolvable:$true] %s40
      %46 = dma.hbm_to_vmem [thread:$0]  %s3, 1024, %s41, [#allocation8], 64, 64, 4
    $region13: #{tpu_custom_call.1} parent=1 // pred_fallthru
      _
    // Predicated region
    $region14: #{tpu_custom_call.1} parent=1 // pred_check
      _
    $region15: #{tpu_custom_call.1} parent=1 // pred_check_branch
      %48 = sbr.rel (0) target = $region17
    $region16: #{tpu_custom_call.1} parent=1 // pred_region
      %49 = dma.done [#allocation5], 128
    $region17: #{tpu_custom_call.1} parent=1 // pred_fallthru
      _
    // Predicated region
    $region18: #{tpu_custom_call.1} parent=1 // pred_check
      _
    $region19: #{tpu_custom_call.1} parent=1 // pred_check_branch
      %51 = sbr.rel (0) target = $region21
    $region20: #{tpu_custom_call.1} parent=1 // pred_region
      %52 = dma.done [#allocation8], 512
    $region21: #{tpu_custom_call.1} parent=1 // pred_fallthru
      _
    // Predicated region
    $region22: #{tpu_custom_call.1} parent=1 // pred_check
      _
    $region23: #{tpu_custom_call.1} parent=1 // pred_check_branch
      %54 = sbr.rel (0) target = $region25
    $region24: #{tpu_custom_call.1} parent=1 // pred_region
      %55 = dma.done [#allocation8], 1024
    $region25: #{tpu_custom_call.1} parent=1 // pred_fallthru
      _
    %s57 = sld [smem:[#allocation3]]
    %s58 = smul.u32 %s57, 2654435761
    %s59 = smul.u32 0, 2246822519
    %s60 = sxor.u32 %s58, %s59
    %v61 = vlaneseq
    %v62 = vshrl.u32 %v61, 7
    %v63 = vmul.u32 %v62, 2654435769
    %v64 = vstv %s60
    %v65 = vadd.s32 %v63, %v64
    %v66 = vld [vmem:[#allocation4] sm:$0xff]
    %v67 = vlaneseq
    %v68 = vand.u32 %v67, 127
    %v69 = vmul.u32 %v68, 668265263
    %v70 = vadd.s32 %v69, %v65
    %v71 = vshrl.u32 %v70, 16
    %v72 = vxor.u32 %v70, %v71
    %v73 = vmul.u32 %v72, 2146121005
    %v74 = vshrl.u32 %v73, 15
    %v75 = vxor.u32 %v73, %v74
    %v76 = vand.u32 %v75, 8388607
    %v77 = vor.u32 %v76, 1065353216
    %v79 = vmul.f32 %v77, 0.2
    %v80 = vadd.f32 %v79, 0.7
    %v81 = vmul.f32 %v66, %v80
    %v82 = vpack.c.bf16 %v81, %v81
    %v83 = vld [vmem:[#allocation7] sm:$0xf]
    %v84 = vld [vmem:[#allocation7 + $0x4] sm:$0xf]
    %v85 = vld [vmem:[#allocation7 + $0x8] sm:$0xf]
    %v86 = vld [vmem:[#allocation7 + $0xc] sm:$0xf]
    %v87 = vld [vmem:[#allocation7 + $0x10] sm:$0xf]
    %v88 = vld [vmem:[#allocation7 + $0x14] sm:$0xf]
    %v89 = vld [vmem:[#allocation7 + $0x18] sm:$0xf]
    %v90 = vld [vmem:[#allocation7 + $0x1c] sm:$0xf]
    %v99 = vunpack.c.l.b16 %v83
    %v100 = vunpack.c.l.b16 %v84
    %v101 = vunpack.c.l.b16 %v85
    %v102 = vunpack.c.l.b16 %v86
    %v103 = vunpack.c.l.b16 %v87
    %v104 = vunpack.c.l.b16 %v88
    %v105 = vunpack.c.l.b16 %v89
    %v106 = vunpack.c.l.b16 %v90
    %v107 = vpack.c.b16 %v100, %v99
    %v108 = vpack.c.b16 %v102, %v101
    %v109 = vpack.c.b16 %v104, %v103
    %v110 = vpack.c.b16 %v106, %v105
    %vm115 = vcmask 523264
    %v117 = vsel %vm115, %v82, 0
    %119 = vmatprep.subr.bf16.mxu0 0
    %120 = vmatpush1.bf16.msra.mxu0 %v107
    %121 = vmatprep.subr.bf16.mxu0 0
    %122 = vmatpush1.bf16.msra.mxu0 %v108
    %123 = vmatprep.subr.bf16.mxu0 0
    %124 = vmatpush1.bf16.msra.mxu0 %v109
    %125 = vmatprep.subr.bf16.mxu0 0
    %126 = vmatpush1.bf16.msra.mxu0 %v110
    %127 = vmatprep.subr.bf16.mxu0 0
    %128 = vmatpush1.bf16.msra.mxu0 0
    %129 = vmatprep.subr.bf16.mxu0 0
    %130 = vmatpush1.bf16.msra.mxu0 0
    %131 = vmatprep.subr.bf16.mxu0 0
    %132 = vmatpush1.bf16.msra.mxu0 0
    %133 = vmatprep.subr.bf16.mxu0 0
    %134 = vmatpush1.bf16.msra.mxu0 0
    %135 = vmatprep.subr.bf16.mxu0 0
    %136 = vmatpush1.bf16.msra.mxu0 0
    %137 = vmatprep.subr.bf16.mxu0 0
    %138 = vmatpush1.bf16.msra.mxu0 0
    %139 = vmatprep.subr.bf16.mxu0 0
    %140 = vmatpush1.bf16.msra.mxu0 0
    %141 = vmatprep.subr.bf16.mxu0 0
    %142 = vmatpush1.bf16.msra.mxu0 0
    %143 = vmatprep.subr.bf16.mxu0 0
    %144 = vmatpush1.bf16.msra.mxu0 0
    %145 = vmatprep.subr.bf16.mxu0 0
    %146 = vmatpush1.bf16.msra.mxu0 0
    %147 = vmatprep.subr.bf16.mxu0 0
    %148 = vmatpush1.bf16.msra.mxu0 0
    %149 = vmatprep.subr.bf16.mxu0 0
    %150 = vmatpush1.bf16.msra.mxu0 0
    %151 = vmatprep.mubr.bf16.mxu0 0
    %152 = vmatmul.mubr.bf16.gmra.mrb[0].mxu0 %v117
    %v153 = vpop.f32.mrb[0].mxu0
    %v154 = vadd.f32 0.0, %v153
    %v155 = vpop.f32.mrb[0].mxu0
    %v156 = vpop.f32.mrb[0].mxu0
    %v157 = vpop.f32.mrb[0].mxu0
    %158 = vdwg.mxu0
    %v159 = vadd.s32 %v65, 1640531527
    %v160 = vadd.s32 %v69, %v159
    %v161 = vshrl.u32 %v160, 16
    %v162 = vxor.u32 %v160, %v161
    %v163 = vmul.u32 %v162, 2146121005
    %v164 = vshrl.u32 %v163, 15
    %v165 = vxor.u32 %v163, %v164
    %v166 = vand.u32 %v165, 8388607
    %v167 = vor.u32 %v166, 1065353216
    %v169 = vmul.f32 %v167, 0.2
    %v170 = vadd.f32 %v169, 0.7
    %v171 = vadd.s32 %v65, 3266489909
    %v172 = vadd.s32 %v69, %v171
    %v173 = vshrl.u32 %v172, 16
    %v174 = vxor.u32 %v172, %v173
    %v175 = vmul.u32 %v174, 2146121005
    %v176 = vshrl.u32 %v175, 15
    %v177 = vxor.u32 %v175, %v176
    %v178 = vand.u32 %v177, 8388607
    %v179 = vor.u32 %v178, 1065353216
    %v181 = vmul.f32 %v179, 0.2
    %v182 = vadd.f32 %v181, 0.7
    %v183 = vmul.f32 %v170, %v182
    %v184 = vmul.f32 %v154, %v183
    %v185 = vmax.f32 %v184, 0.0
    %v186 = vpack.c.bf16 %v185, %v185
    %v187 = vld [vmem:[#allocation9] sm:$0xf]
    %v188 = vld [vmem:[#allocation9 + $0x4] sm:$0xf]
    %v189 = vld [vmem:[#allocation9 + $0x8] sm:$0xf]
    %v190 = vld [vmem:[#allocation9 + $0xc] sm:$0xf]
    %v191 = vld [vmem:[#allocation9 + $0x10] sm:$0xf]
    %v192 = vld [vmem:[#allocation9 + $0x14] sm:$0xf]
    %v193 = vld [vmem:[#allocation9 + $0x18] sm:$0xf]
    %v194 = vld [vmem:[#allocation9 + $0x1c] sm:$0xf]
    %v195 = vld [vmem:[#allocation9 + $0x20] sm:$0xf]
    %v196 = vld [vmem:[#allocation9 + $0x24] sm:$0xf]
    %v197 = vld [vmem:[#allocation9 + $0x28] sm:$0xf]
    %v198 = vld [vmem:[#allocation9 + $0x2c] sm:$0xf]
    %v199 = vld [vmem:[#allocation9 + $0x30] sm:$0xf]
    %v200 = vld [vmem:[#allocation9 + $0x34] sm:$0xf]
    %v201 = vld [vmem:[#allocation9 + $0x38] sm:$0xf]
    %v202 = vld [vmem:[#allocation9 + $0x3c] sm:$0xf]
    %v219 = vunpack.c.l.b16 %v187
    %v220 = vunpack.c.l.b16 %v188
    %v221 = vunpack.c.l.b16 %v189
    %v222 = vunpack.c.l.b16 %v190
    %v223 = vunpack.c.l.b16 %v191
    %v224 = vunpack.c.l.b16 %v192
    %v225 = vunpack.c.l.b16 %v193
    %v226 = vunpack.c.l.b16 %v194
    %v227 = vunpack.c.l.b16 %v195
    %v228 = vunpack.c.l.b16 %v196
    %v229 = vunpack.c.l.b16 %v197
    %v230 = vunpack.c.l.b16 %v198
    %v231 = vunpack.c.l.b16 %v199
    %v232 = vunpack.c.l.b16 %v200
    %v233 = vunpack.c.l.b16 %v201
    %v234 = vunpack.c.l.b16 %v202
    %v235 = vpack.c.b16 %v220, %v219
    %v236 = vpack.c.b16 %v222, %v221
    %v237 = vpack.c.b16 %v224, %v223
    %v238 = vpack.c.b16 %v226, %v225
    %v239 = vpack.c.b16 %v228, %v227
    %v240 = vpack.c.b16 %v230, %v229
    %v241 = vpack.c.b16 %v232, %v231
    %v242 = vpack.c.b16 %v234, %v233
    %251 = vmatprep.subr.bf16.mxu0 0
    %252 = vmatpush1.bf16.msra.mxu0 %v235
    %253 = vmatprep.subr.bf16.mxu0 0
    %254 = vmatpush1.bf16.msra.mxu0 %v236
    %255 = vmatprep.subr.bf16.mxu0 0
    %256 = vmatpush1.bf16.msra.mxu0 %v237
    %257 = vmatprep.subr.bf16.mxu0 0
    %258 = vmatpush1.bf16.msra.mxu0 %v238
    %259 = vmatprep.subr.bf16.mxu0 0
    %260 = vmatpush1.bf16.msra.mxu0 %v239
    %261 = vmatprep.subr.bf16.mxu0 0
    %262 = vmatpush1.bf16.msra.mxu0 %v240
    %263 = vmatprep.subr.bf16.mxu0 0
    %264 = vmatpush1.bf16.msra.mxu0 %v241
    %265 = vmatprep.subr.bf16.mxu0 0
    %266 = vmatpush1.bf16.msra.mxu0 %v242
    %267 = vmatprep.subr.bf16.mxu0 0
    %268 = vmatpush1.bf16.msra.mxu0 0
    %269 = vmatprep.subr.bf16.mxu0 0
    %270 = vmatpush1.bf16.msra.mxu0 0
    %271 = vmatprep.subr.bf16.mxu0 0
    %272 = vmatpush1.bf16.msra.mxu0 0
    %273 = vmatprep.subr.bf16.mxu0 0
    %274 = vmatpush1.bf16.msra.mxu0 0
    %275 = vmatprep.subr.bf16.mxu0 0
    %276 = vmatpush1.bf16.msra.mxu0 0
    %277 = vmatprep.subr.bf16.mxu0 0
    %278 = vmatpush1.bf16.msra.mxu0 0
    %279 = vmatprep.subr.bf16.mxu0 0
    %280 = vmatpush1.bf16.msra.mxu0 0
    %281 = vmatprep.subr.bf16.mxu0 0
    %282 = vmatpush1.bf16.msra.mxu0 0
    %283 = vmatprep.mubr.bf16.mxu0 0
    %284 = vmatmul.mubr.bf16.gmra.mrb[0].mxu0 %v186
    %v285 = vpop.f32.mrb[0].mxu0
    %v286 = vadd.f32 0.0, %v285
    %v287 = vpop.f32.mrb[0].mxu0
    %v288 = vpop.f32.mrb[0].mxu0
    %v289 = vpop.f32.mrb[0].mxu0
    %290 = vdwg.mxu0
    %v291 = vadd.s32 %v65, 461845907
    %v292 = vadd.s32 %v69, %v291
    %v293 = vshrl.u32 %v292, 16
    %v294 = vxor.u32 %v292, %v293
    %v295 = vmul.u32 %v294, 2146121005
    %v296 = vshrl.u32 %v295, 15
    %v297 = vxor.u32 %v295, %v296
    %v298 = vand.u32 %v297, 8388607
    %v299 = vor.u32 %v298, 1065353216
    %v301 = vmul.f32 %v299, 0.2
    %v302 = vadd.f32 %v301, 0.7
    %v303 = vmul.f32 %v286, %v302
    %v304 = vpack.c.bf16 %v303, %v303
    %305 = vst [vmem:[#allocation10] sm:$0xf] %v304
    // Predicated region
    $region26: #{tpu_custom_call.1} parent=1 // pred_check
      _
    $region27: #{tpu_custom_call.1} parent=1 // pred_check_branch
      %307 = sbr.rel (0) target = $region29
    $region28: #{tpu_custom_call.1} parent=1 // pred_region
      %s309 = ssub.s32 64, 64
      %310 = vsyncadd [#allocation6], %s309
      %s312 = sshll.u32 [#allocation10], 4
      %s313 = int_to_ptr.vmem [resolvable:$true] %s312
      %315 = dma.vmem_to_hbm [thread:$0]  %s313, 64, %s4, [#allocation6]
    $region29: #{tpu_custom_call.1} parent=1 // pred_fallthru
      _
    // Predicated region
    $region30: #{tpu_custom_call.1} parent=1 // pred_check
      _
    $region31: #{tpu_custom_call.1} parent=1 // pred_check_branch
      %317 = sbr.rel (0) target = $region33
    $region32: #{tpu_custom_call.1} parent=1 // pred_region
      %318 = dma.done [#allocation6], 64
    $region33: #{tpu_custom_call.1} parent=1 // pred_fallthru
      _
    %319 = vsyncpa [#allocation5], 1
    %320 = vsyncpa [#allocation8], 1
    %321 = vsyncpa [#allocation6], 1

</llo_original>
